<compile_context>
chip_gen: v7x
topology: tpu7x:2x2x1
jax: 0.10.0
libtpu: 0.0.40
codegen_flags: <defaults>
</compile_context>

<pallas_src>
import math

import jax
import jax.numpy as jnp
from jax import lax
from jax.experimental import pallas as pl
from jax.experimental.pallas import tpu as pltpu


def _round_up(a, b):
    return ((a + b - 1) // b) * b


def _pick_tiles(m, kd_pad, cout_pad):
    """Choose (tile_m, tile_n, grid_m, grid_n, m_pad, vmem1, vmem2)."""
    # 256-wide output tiles fill v6e/v7x's 256x256 MXU; 128 for small c_out
    # (and is the native width on v5e's 128x128 MXU).
    tile_n = min(cout_pad, 256)
    grid_n = cout_pad // tile_n

    # Double-buffered per-step VMEM (lane-padded layout for the patch tile):
    #   2 x (tile_m x kd_lanes bf16) patches + 2 x (tile_m x tile_n bf16) conv
    #   + 2 x (kd_pad x tile_n bf16) weight panel + small stats blocks.
    kd_lanes = _round_up(kd_pad, 128)
    per_row = 2 * (kd_lanes * 2) + 2 * (tile_n * 2)
    w_bytes = 2 * kd_pad * tile_n * 2
    budget = 24 * 1024 * 1024                 # conservative even for v7x (64 MiB)
    avail = max(budget - w_bytes, 4 * 1024 * 1024)
    t = avail // per_row
    t = max(128, min(8192, (t // 128) * 128))  # big tiles amortize ~0.35us/step

    # Balance M tiles so padding stays below one tile.
    m128 = _round_up(m, 128)
    grid_m = -(-m128 // t)
    tile_m = _round_up(-(-m128 // grid_m), 128)
    m_pad = tile_m * grid_m

    vmem1 = tile_m * per_row + w_bytes + 4 * (8 * tile_n * 4) + (1 << 20)
    vmem2 = 2 * tile_m * tile_n * (2 + 4) + 4 * tile_n * 4 + (1 << 20)
    return tile_m, tile_n, grid_m, grid_n, m_pad, vmem1, vmem2


def conv_stats_kernel(p_ref, w_ref, conv_ref, sum_ref, sq_ref):
    """One MXU matmul tile; conv stored bf16, per-tile f32 partial stats.

    Every grid step writes its own stats block (reduced later in the JAX
    glue), so there are no resident accumulators and the whole grid is
    parallel."""
    conv = jnp.dot(p_ref[...], w_ref[...], preferred_element_type=jnp.float32)
    conv_ref[...] = conv.astype(conv_ref.dtype)
    s = jnp.sum(conv, axis=0, keepdims=True)          # (1, tile_n) f32
    q = jnp.sum(conv * conv, axis=0, keepdims=True)   # (1, tile_n) f32
    # Stats blocks are (8, tile_n) for (8,128)-friendly tiling; replicate the
    # row (the glue reads row 0 of each block).
    sum_ref[...] = jnp.broadcast_to(s, sum_ref.shape)
    sq_ref[...] = jnp.broadcast_to(q, sq_ref.shape)


def bn_relu_kernel(conv_ref, scale_ref, shift_ref, o_ref):
    """Folded batch-norm + ReLU: upcast bf16 conv, one f32 FMA + max/element."""
    y = conv_ref[...].astype(jnp.float32) * scale_ref[...] + shift_ref[...]
    o_ref[...] = jnp.maximum(y, 0.0)


class ConvBNRelu:
    """JAX/Pallas port of ConvBNRelu (module in default training mode)."""

    def __init__(self, c_in_max, c_out_max, kernel_size, stride, padding,
                 bn_momentum, bn_eps, conv_bias=False, affine_bn=True, key=None):
        del padding, conv_bias  # VarConv2d.forward ignores init padding; bias=False
        self.c_in_max = c_in_max
        self.c_out_max = c_out_max
        self.kernel_size = kernel_size
        self.k_max = kernel_size
        self.stride = stride
        self.bn_eps = float(bn_eps)
        self.bn_momentum = bn_momentum
        self.affine_bn = affine_bn

        if key is None:
            key = jax.random.PRNGKey(0)
        # deterministic init, same shape/fan-in convention as nn.Conv2d
        fan_in = c_in_max * kernel_size * kernel_size
        bound = 1.0 / math.sqrt(fan_in)
        self.weight = jax.random.uniform(
            key, (c_out_max, c_in_max, kernel_size, kernel_size),
            minval=-bound, maxval=bound, dtype=jnp.float32)
        self.gamma = jnp.ones((c_out_max,), jnp.float32)
        self.beta = jnp.zeros((c_out_max,), jnp.float32)
        # TODO(synk): running_mean/running_var EMA update (stateful side effect
        # of training-mode BatchNorm) is not reproduced; normalization itself
        # uses batch statistics exactly as F.batch_norm does in training mode.

    def __call__(self, x, c_out=None, kernel_size=None):
        if c_out is None:
            c_out = self.c_out_max
        if kernel_size is None:
            kernel_size = self.kernel_size
        N, C, H, W = x.shape
        k = kernel_size
        km = self.k_max
        s = self.stride

        # VarConv2d: centered crop of the weight + slice of in/out channels
        # (same formula as the PyTorch module; assumes odd kernel sizes).
        lo = km // 2 - k // 2
        hi = km // 2 + k // 2 + 1
        w = self.weight[:c_out, :C, lo:hi, lo:hi]                 # (c_out, C, k, k)
        w_mat = w.reshape(c_out, C * k * k).T                     # (Kd, c_out)

        pad = k // 2
        Hout = (H + 2 * pad - k) // s + 1
        Wout = (W + 2 * pad - k) // s + 1

        # im2col (wrapper-side glue, plain JAX).
        # TODO(synk): a fully fused variant would do k*k shifted matmuls over an
        # NHWC input tile inside the kernel (avoids the k^2 HBM duplication);
        # kept wrapper-side to keep stride/halo handling robust.
        xp = jnp.pad(x, ((0, 0), (0, 0), (pad, pad), (pad, pad)))
        cols = []
        for dy in range(k):
            for dx in range(k):
                cols.append(
                    xp[:, :, dy:dy + (Hout - 1) * s + 1:s,
                             dx:dx + (Wout - 1) * s + 1:s])       # (N, C, Hout, Wout)
        patches = jnp.stack(cols, axis=2)                         # (N, C, k*k, Ho, Wo)
        patches = patches.transpose(0, 3, 4, 1, 2)                # (N, Ho, Wo, C, k*k)
        M = N * Hout * Wout
        Kd = C * k * k
        patches = patches.reshape(M, Kd).astype(jnp.bfloat16)     # cast before pad
        w_mat = w_mat.astype(jnp.bfloat16)

        # Only the output/lane dim needs 128-padding; the contraction dim is
        # merely 8-aligned (no 3.5x inflation of patch bytes for small C*k*k).
        kd_pad = _round_up(Kd, 8)
        cout_pad = _round_up(c_out, 128)
        tile_m, tile_n, grid_m, grid_n, m_pad, vmem1, vmem2 = _pick_tiles(
            M, kd_pad, cout_pad)

        patches_bf = jnp.pad(patches, ((0, m_pad - M), (0, kd_pad - Kd)))
        w_bf = jnp.pad(w_mat, ((0, kd_pad - Kd), (0, cout_pad - c_out)))

        # ---- Phase 1: conv matmul (bf16 out) + per-tile f32 sum / sum_sq ------
        w_reads = grid_m if grid_n > 1 else 1   # weight re-fetched only if cout tiled
        flops1 = 2 * m_pad * kd_pad * cout_pad + 3 * m_pad * cout_pad
        bytes1 = (m_pad * kd_pad * 2 + w_reads * kd_pad * cout_pad * 2
                  + m_pad * cout_pad * 2 + 2 * grid_m * 8 * cout_pad * 4)
        conv_out, ch_sum8, ch_sq8 = pl.pallas_call(
            conv_stats_kernel,
            out_shape=(jax.ShapeDtypeStruct((m_pad, cout_pad), jnp.bfloat16),
                       jax.ShapeDtypeStruct((grid_m * 8, cout_pad), jnp.float32),
                       jax.ShapeDtypeStruct((grid_m * 8, cout_pad), jnp.float32)),
            grid_spec=pltpu.PrefetchScalarGridSpec(
                num_scalar_prefetch=0,
                grid=(grid_m, grid_n),        # cout innermost: patch tile read once
                in_specs=[
                    pl.BlockSpec((tile_m, kd_pad), lambda i, j: (i, 0)),
                    pl.BlockSpec((kd_pad, tile_n), lambda i, j: (0, j)),
                ],
                out_specs=[
                    pl.BlockSpec((tile_m, tile_n), lambda i, j: (i, j)),
                    pl.BlockSpec((8, tile_n), lambda i, j: (i, j)),
                    pl.BlockSpec((8, tile_n), lambda i, j: (i, j)),
                ],
            ),
            compiler_params=pltpu.CompilerParams(
                dimension_semantics=("parallel", "parallel"),
                vmem_limit_bytes=int(max(vmem1 + (4 << 20), 16 << 20))),
            cost_estimate=pl.CostEstimate(
                flops=flops1, transcendentals=0, bytes_accessed=bytes1),
        )(patches_bf, w_bf)

        # ---- Fold BN (training mode: batch mean, biased var) into scale/shift --
        # Per-tile partial sums are reduced here in f32.
        # TODO(synk): for extremely large M the E[x^2]-E[x]^2 form can cancel;
        # a centered/compensated formulation would be needed in that regime.
        inv_m = 1.0 / float(M)
        ch_sum = ch_sum8.reshape(grid_m, 8, cout_pad)[:, 0, :].sum(axis=0)
        ch_sq = ch_sq8.reshape(grid_m, 8, cout_pad)[:, 0, :].sum(axis=0)
        mean = ch_sum * inv_m                                     # (cout_pad,)
        var = jnp.maximum(ch_sq * inv_m - mean * mean, 0.0)
        gamma = jnp.pad(self.gamma[:c_out], (0, cout_pad - c_out))
        beta = jnp.pad(self.beta[:c_out], (0, cout_pad - c_out))
        scale_v = gamma * lax.rsqrt(var + self.bn_eps)
        shift_v = beta - mean * scale_v
        scale = scale_v.reshape(1, cout_pad)
        shift = shift_v.reshape(1, cout_pad)

        # ---- Phase 2: y = max(f32(conv) * scale + shift, 0) --------------------
        flops2 = 3 * m_pad * cout_pad
        bytes2 = m_pad * cout_pad * (2 + 4) + 2 * cout_pad * 4
        out_mat = pl.pallas_call(
            bn_relu_kernel,
            out_shape=jax.ShapeDtypeStruct((m_pad, cout_pad), jnp.float32),
            grid_spec=pltpu.PrefetchScalarGridSpec(
                num_scalar_prefetch=0,
                grid=(grid_m, grid_n),
                in_specs=[
                    pl.BlockSpec((tile_m, tile_n), lambda i, j: (i, j)),
                    pl.BlockSpec((1, tile_n), lambda i, j: (0, j)),
                    pl.BlockSpec((1, tile_n), lambda i, j: (0, j)),
                ],
                out_specs=pl.BlockSpec((tile_m, tile_n), lambda i, j: (i, j)),
            ),
            compiler_params=pltpu.CompilerParams(
                dimension_semantics=("parallel", "parallel"),
                vmem_limit_bytes=int(max(vmem2 + (4 << 20), 16 << 20))),
            cost_estimate=pl.CostEstimate(
                flops=flops2, transcendentals=0, bytes_accessed=bytes2),
        )(conv_out, scale, shift)

        out_mat = out_mat[:M, :c_out]                             # drop padding
        out = out_mat.reshape(N, Hout, Wout, c_out)
        # TODO(synk): NHWC-accepting consumers could skip this transpose and save
        # one full output-sized HBM round trip; kept for NCHW parity.
        return out.transpose(0, 3, 1, 2)                          # NCHW


def _reference(x, weight, gamma, beta, eps, stride, k, quantize_conv):
    """Training-mode Conv+BN+ReLU in f32 (bf16 MXU operands, f32 accumulation).
    quantize_conv=True mirrors the kernel's bf16 conv intermediate exactly."""
    pad = k // 2
    conv = lax.conv_general_dilated(
        x.astype(jnp.bfloat16), weight.astype(jnp.bfloat16),
        (stride, stride), [(pad, pad), (pad, pad)],
        dimension_numbers=("NCHW", "OIHW", "NCHW"),
        preferred_element_type=jnp.float32)
    mean = conv.mean(axis=(0, 2, 3), keepdims=True)
    var = jnp.square(conv - mean).mean(axis=(0, 2, 3), keepdims=True)
    scale = gamma.reshape(1, -1, 1, 1) * lax.rsqrt(var + eps)
    shift = beta.reshape(1, -1, 1, 1) - mean * scale
    c = conv.astype(jnp.bfloat16).astype(jnp.float32) if quantize_conv else conv
    return jnp.maximum(c * scale + shift, 0.0)


if __name__ == "__main__":
    key = jax.random.PRNGKey(0)
    kx, kw = jax.random.split(key)

    N, C_in, H, W = 2, 4, 16, 16
    C_out, K, stride = 8, 3, 1

    x = jax.random.normal(kx, (N, C_in, H, W), dtype=jnp.float32)

    module = ConvBNRelu(c_in_max=C_in, c_out_max=C_out, kernel_size=K,
                        stride=stride, padding=K // 2,
                        bn_momentum=0.1, bn_eps=1e-5, key=kw)

    out = jax.block_until_ready(module(x))
    assert out.shape == (N, C_out, H, W)

    # Tight check vs a reference that mirrors the kernel's numerics (bf16 conv
    # intermediate), plus a looser sanity check vs the pure-f32 BN math.
    ref_matched = _reference(x, module.weight, module.gamma, module.beta,
                             module.bn_eps, stride, K, quantize_conv=True)
    ref_f32 = _reference(x, module.weight, module.gamma, module.beta,
                         module.bn_eps, stride, K, quantize_conv=False)
    err_m = float(jnp.max(jnp.abs(out - ref_matched)))
    err_f = float(jnp.max(jnp.abs(out - ref_f32)))
    assert jnp.allclose(out, ref_matched, atol=2e-3, rtol=2e-3), err_m
    assert jnp.allclose(out, ref_f32, atol=3e-2, rtol=3e-2), err_f

    print("KERNEL_OK")
</pallas_src>

<mosaic_0001>
module attributes {stable_mosaic.version = 11 : i64} {
  func.func @conv_stats_kernel(%arg0: i32, %arg1: i32, %arg2: memref<512x40xbf16, #tpu.memory_space<vmem>>, %arg3: memref<40x128xbf16, #tpu.memory_space<vmem>>, %arg4: memref<512x128xbf16, #tpu.memory_space<vmem>>, %arg5: memref<8x128xf32, #tpu.memory_space<vmem>>, %arg6: memref<8x128xf32, #tpu.memory_space<vmem>>) attributes {dimension_semantics = [#tpu.dimension_semantics<parallel>, #tpu.dimension_semantics<parallel>], iteration_bounds = array<i64: 1, 1>, scalar_prefetch = 0 : i64, scratch_operands = 0 : i64, tpu.core_type = #tpu.core_type<tc>, window_params = [{transform_indices = @transform_0, window_bounds = array<i64: 512, 40>}, {transform_indices = @transform_1, window_bounds = array<i64: 40, 128>}, {transform_indices = @transform_2, window_bounds = array<i64: 512, 128>}, {transform_indices = @transform_3, window_bounds = array<i64: 8, 128>}, {transform_indices = @transform_4, window_bounds = array<i64: 8, 128>}]} {
    %c0 = arith.constant 0 : index
    %c0_0 = arith.constant 0 : index
    %0 = vector.load %arg2[%c0, %c0_0] : memref<512x40xbf16, #tpu.memory_space<vmem>>, vector<512x40xbf16>
    %c0_1 = arith.constant 0 : index
    %c0_2 = arith.constant 0 : index
    %1 = vector.load %arg3[%c0_1, %c0_2] : memref<40x128xbf16, #tpu.memory_space<vmem>>, vector<40x128xbf16>
    %cst = arith.constant dense<0.000000e+00> : vector<512x128xf32>
    %2 = tpu.matmul %0, %1, %cst {dimension_numbers = #tpu.dot_dimension_numbers<[1], [0], [0], [1], [0, 0, 1, 1], [], []>} : vector<512x40xbf16>, vector<40x128xbf16>, vector<512x128xf32> -> vector<512x128xf32>
    %3 = arith.truncf %2 : vector<512x128xf32> to vector<512x128xbf16>
    %c0_3 = arith.constant 0 : index
    %c0_4 = arith.constant 0 : index
    %4 = vector.load %arg4[%c0_3, %c0_4] : memref<512x128xbf16, #tpu.memory_space<vmem>>, vector<512x128xbf16>
    tpu.vector_store %arg4[%c0_3, %c0_4], %3 {strides = array<i32>} : memref<512x128xbf16, #tpu.memory_space<vmem>>, vector<512x128xbf16>,
    %cst_5 = arith.constant dense<0.000000e+00> : vector<128xf32>
    %5 = vector.multi_reduction <add>, %2, %cst_5 [0] : vector<512x128xf32> to vector<128xf32>
    %6 = vector.shape_cast %5 : vector<128xf32> to vector<1x128xf32>
    %7 = arith.mulf %2, %2 : vector<512x128xf32>
    %cst_6 = arith.constant dense<0.000000e+00> : vector<128xf32>
    %8 = vector.multi_reduction <add>, %7, %cst_6 [0] : vector<512x128xf32> to vector<128xf32>
    %9 = vector.shape_cast %8 : vector<128xf32> to vector<1x128xf32>
    %10 = vector.shape_cast %6 : vector<1x128xf32> to vector<1x128xf32>
    %11 = vector.broadcast %10 : vector<1x128xf32> to vector<8x128xf32>
    %c0_7 = arith.constant 0 : index
    %c0_8 = arith.constant 0 : index
    %12 = vector.load %arg5[%c0_7, %c0_8] : memref<8x128xf32, #tpu.memory_space<vmem>>, vector<8x128xf32>
    tpu.vector_store %arg5[%c0_7, %c0_8], %11 {strides = array<i32>} : memref<8x128xf32, #tpu.memory_space<vmem>>, vector<8x128xf32>,
    %13 = vector.shape_cast %9 : vector<1x128xf32> to vector<1x128xf32>
    %14 = vector.broadcast %13 : vector<1x128xf32> to vector<8x128xf32>
    %c0_9 = arith.constant 0 : index
    %c0_10 = arith.constant 0 : index
    %15 = vector.load %arg6[%c0_9, %c0_10] : memref<8x128xf32, #tpu.memory_space<vmem>>, vector<8x128xf32>
    tpu.vector_store %arg6[%c0_9, %c0_10], %14 {strides = array<i32>} : memref<8x128xf32, #tpu.memory_space<vmem>>, vector<8x128xf32>,
    return
  }
  func.func @transform_0(%arg0: i32, %arg1: i32) -> (i32, i32) {
    %c0_i32 = arith.constant 0 : i32
    %c0_i32_0 = arith.constant 0 : i32
    return %arg0, %c0_i32 : i32, i32
  }
  func.func @transform_1(%arg0: i32, %arg1: i32) -> (i32, i32) {
    %c0_i32 = arith.constant 0 : i32
    %c0_i32_0 = arith.constant 0 : i32
    return %c0_i32, %arg1 : i32, i32
  }
  func.func @transform_2(%arg0: i32, %arg1: i32) -> (i32, i32) {
    %c0_i32 = arith.constant 0 : i32
    return %arg0, %arg1 : i32, i32
  }
  func.func @transform_3(%arg0: i32, %arg1: i32) -> (i32, i32) {
    %c0_i32 = arith.constant 0 : i32
    return %arg0, %arg1 : i32, i32
  }
  func.func @transform_4(%arg0: i32, %arg1: i32) -> (i32, i32) {
    %c0_i32 = arith.constant 0 : i32
    return %arg0, %arg1 : i32, i32
  }
}

</mosaic_0001>

<llo_original>
// kernel: tpu_custom_call.1
$region0: #{tpu_custom_call.1}
  #allocation0 [shape = 'u32[]', space=smem, size = 0x4, offset = 0x4, fixed_abs, tag = 'smem constant byte address 0x4 - core index']
  #allocation1 [shape = 'u32[144,128]{1,0:T(1,128)}', space=vmem, size = 0x12000, scoped, tag = 'internal scratch']
  %s0 = inlined_call_operand.vmem [shape: bf16[512,40], index: 0, kind: input, shape index: {}]
  %s1 = inlined_call_operand.vmem [shape: bf16[40,128], index: 1, kind: input, shape index: {}]
  %s2 = inlined_call_operand.hbm [shape: bf16[512,128], index: 2, kind: output, shape index: {0}]
  %s3 = inlined_call_operand.hbm [shape: f32[8,128], index: 3, kind: output, shape index: {1}]
  %s4 = inlined_call_operand.hbm [shape: f32[8,128], index: 4, kind: output, shape index: {2}]
  %5 = xla_tuple %s2, %s3, %s4
  %s6 = sld [smem:[#allocation0]]
  $region34: #{tpu_custom_call.1} parent=0
    _
  %s8 = ssub.s32 1, %s6
  %s9 = scalar_select 0, %s8, %s6
  $region1: #{tpu_custom_call.1} parent=0
    #allocation2 [shape = 'u8[131072]{0}', space=vmem, size = 0x20000, scoped, tag = 'output window, operand 0, single buffered']
    #allocation3 [shape = 's32[1]{0}', space=sflag, size = 0x4, scoped, tag = 'scoped memory for tpu_custom_call.1']
    #allocation4 [shape = 'u8[4096]{0}', space=vmem, size = 0x1000, scoped, tag = 'output window, operand 1, single buffered']
    #allocation5 [shape = 's32[1]{0}', space=sflag, size = 0x4, scoped, tag = 'scoped memory for tpu_custom_call.1']
    #allocation6 [shape = 'u8[4096]{0}', space=vmem, size = 0x1000, scoped, tag = 'output window, operand 2, single buffered']
    %10 = vsyncpa [#allocation3], 0
    %11 = vsyncpa [#allocation5], 0
    // Predicated region
    $region2: #{tpu_custom_call.1} parent=1 // pred_check
      _
    $region3: #{tpu_custom_call.1} parent=1 // pred_check_branch
      %13 = sbr.rel (0) target = $region5
    $region4: #{tpu_custom_call.1} parent=1 // pred_region
      _
    $region5: #{tpu_custom_call.1} parent=1 // pred_fallthru
      _
    // Predicated region
    $region6: #{tpu_custom_call.1} parent=1 // pred_check
      _
    $region7: #{tpu_custom_call.1} parent=1 // pred_check_branch
      %15 = sbr.rel (0) target = $region9
    $region8: #{tpu_custom_call.1} parent=1 // pred_region
      _
    $region9: #{tpu_custom_call.1} parent=1 // pred_fallthru
      _
    %v17 = vld [vmem:[%s0] sm:$0xf]
    %v18 = vld [vmem:[%s0 + $0x4] sm:$0xf]
    %v19 = vld [vmem:[%s0 + $0x8] sm:$0xf]
    %v20 = vld [vmem:[%s0 + $0xc] sm:$0xf]
    %v21 = vld [vmem:[%s0 + $0x10] sm:$0xf]
    %v22 = vld [vmem:[%s0 + $0x14] sm:$0xf]
    %v23 = vld [vmem:[%s0 + $0x18] sm:$0xf]
    %v24 = vld [vmem:[%s0 + $0x1c] sm:$0xf]
    %v25 = vld [vmem:[%s0 + $0x20] sm:$0xf]
    %v26 = vld [vmem:[%s0 + $0x24] sm:$0xf]
    %v27 = vld [vmem:[%s0 + $0x28] sm:$0xf]
    %v28 = vld [vmem:[%s0 + $0x2c] sm:$0xf]
    %v29 = vld [vmem:[%s0 + $0x30] sm:$0xf]
    %v30 = vld [vmem:[%s0 + $0x34] sm:$0xf]
    %v31 = vld [vmem:[%s0 + $0x38] sm:$0xf]
    %v32 = vld [vmem:[%s0 + $0x3c] sm:$0xf]
    %v33 = vld [vmem:[%s0 + $0x40] sm:$0xf]
    %v34 = vld [vmem:[%s0 + $0x44] sm:$0xf]
    %v35 = vld [vmem:[%s0 + $0x48] sm:$0xf]
    %v36 = vld [vmem:[%s0 + $0x4c] sm:$0xf]
    %v37 = vld [vmem:[%s0 + $0x50] sm:$0xf]
    %v38 = vld [vmem:[%s0 + $0x54] sm:$0xf]
    %v39 = vld [vmem:[%s0 + $0x58] sm:$0xf]
    %v40 = vld [vmem:[%s0 + $0x5c] sm:$0xf]
    %v41 = vld [vmem:[%s0 + $0x60] sm:$0xf]
    %v42 = vld [vmem:[%s0 + $0x64] sm:$0xf]
    %v43 = vld [vmem:[%s0 + $0x68] sm:$0xf]
    %v44 = vld [vmem:[%s0 + $0x6c] sm:$0xf]
    %v45 = vld [vmem:[%s0 + $0x70] sm:$0xf]
    %v46 = vld [vmem:[%s0 + $0x74] sm:$0xf]
    %v47 = vld [vmem:[%s0 + $0x78] sm:$0xf]
    %v48 = vld [vmem:[%s0 + $0x7c] sm:$0xf]
    %v49 = vld [vmem:[%s0 + $0x80] sm:$0xf]
    %v50 = vld [vmem:[%s0 + $0x84] sm:$0xf]
    %v51 = vld [vmem:[%s0 + $0x88] sm:$0xf]
    %v52 = vld [vmem:[%s0 + $0x8c] sm:$0xf]
    %v53 = vld [vmem:[%s0 + $0x90] sm:$0xf]
    %v54 = vld [vmem:[%s0 + $0x94] sm:$0xf]
    %v55 = vld [vmem:[%s0 + $0x98] sm:$0xf]
    %v56 = vld [vmem:[%s0 + $0x9c] sm:$0xf]
    %v57 = vld [vmem:[%s0 + $0xa0] sm:$0xf]
    %v58 = vld [vmem:[%s0 + $0xa4] sm:$0xf]
    %v59 = vld [vmem:[%s0 + $0xa8] sm:$0xf]
    %v60 = vld [vmem:[%s0 + $0xac] sm:$0xf]
    %v61 = vld [vmem:[%s0 + $0xb0] sm:$0xf]
    %v62 = vld [vmem:[%s0 + $0xb4] sm:$0xf]
    %v63 = vld [vmem:[%s0 + $0xb8] sm:$0xf]
    %v64 = vld [vmem:[%s0 + $0xbc] sm:$0xf]
    %v65 = vld [vmem:[%s0 + $0xc0] sm:$0xf]
    %v66 = vld [vmem:[%s0 + $0xc4] sm:$0xf]
    %v67 = vld [vmem:[%s0 + $0xc8] sm:$0xf]
    %v68 = vld [vmem:[%s0 + $0xcc] sm:$0xf]
    %v69 = vld [vmem:[%s0 + $0xd0] sm:$0xf]
    %v70 = vld [vmem:[%s0 + $0xd4] sm:$0xf]
    %v71 = vld [vmem:[%s0 + $0xd8] sm:$0xf]
    %v72 = vld [vmem:[%s0 + $0xdc] sm:$0xf]
    %v73 = vld [vmem:[%s0 + $0xe0] sm:$0xf]
    %v74 = vld [vmem:[%s0 + $0xe4] sm:$0xf]
    %v75 = vld [vmem:[%s0 + $0xe8] sm:$0xf]
    %v76 = vld [vmem:[%s0 + $0xec] sm:$0xf]
    %v77 = vld [vmem:[%s0 + $0xf0] sm:$0xf]
    %v78 = vld [vmem:[%s0 + $0xf4] sm:$0xf]
    %v79 = vld [vmem:[%s0 + $0xf8] sm:$0xf]
    %v80 = vld [vmem:[%s0 + $0xfc] sm:$0xf]
    %v81 = vld [vmem:[%s1] sm:$0xf]
    %v82 = vld [vmem:[%s1 + $0x4] sm:$0xf]
    %v83 = vld [vmem:[%s1 + $0x8] sm:$0xf]
    %v84 = vld [vmem:[%s1 + $0xc] sm:$0xf]
    %v85 = vld [vmem:[%s1 + $0x10] sm:$0xf]
    %v150 = vunpack.c.l.b16 %v17
    %v151 = vunpack.c.l.b16 %v18
    %v152 = vunpack.c.l.b16 %v19
    %v153 = vunpack.c.l.b16 %v20
    %v154 = vunpack.c.l.b16 %v21
    %v155 = vunpack.c.l.b16 %v22
    %v156 = vunpack.c.l.b16 %v23
    %v157 = vunpack.c.l.b16 %v24
    %v158 = vunpack.c.l.b16 %v25
    %v159 = vunpack.c.l.b16 %v26
    %v160 = vunpack.c.l.b16 %v27
    %v161 = vunpack.c.l.b16 %v28
    %v162 = vunpack.c.l.b16 %v29
    %v163 = vunpack.c.l.b16 %v30
    %v164 = vunpack.c.l.b16 %v31
    %v165 = vunpack.c.l.b16 %v32
    %v166 = vunpack.c.l.b16 %v33
    %v167 = vunpack.c.l.b16 %v34
    %v168 = vunpack.c.l.b16 %v35
    %v169 = vunpack.c.l.b16 %v36
    %v170 = vunpack.c.l.b16 %v37
    %v171 = vunpack.c.l.b16 %v38
    %v172 = vunpack.c.l.b16 %v39
    %v173 = vunpack.c.l.b16 %v40
    %v174 = vunpack.c.l.b16 %v41
    %v175 = vunpack.c.l.b16 %v42
    %v176 = vunpack.c.l.b16 %v43
    %v177 = vunpack.c.l.b16 %v44
    %v178 = vunpack.c.l.b16 %v45
    %v179 = vunpack.c.l.b16 %v46
    %v180 = vunpack.c.l.b16 %v47
    %v181 = vunpack.c.l.b16 %v48
    %v182 = vunpack.c.l.b16 %v49
    %v183 = vunpack.c.l.b16 %v50
    %v184 = vunpack.c.l.b16 %v51
    %v185 = vunpack.c.l.b16 %v52
    %v186 = vunpack.c.l.b16 %v53
    %v187 = vunpack.c.l.b16 %v54
    %v188 = vunpack.c.l.b16 %v55
    %v189 = vunpack.c.l.b16 %v56
    %v190 = vunpack.c.l.b16 %v57
    %v191 = vunpack.c.l.b16 %v58
    %v192 = vunpack.c.l.b16 %v59
    %v193 = vunpack.c.l.b16 %v60
    %v194 = vunpack.c.l.b16 %v61
    %v195 = vunpack.c.l.b16 %v62
    %v196 = vunpack.c.l.b16 %v63
    %v197 = vunpack.c.l.b16 %v64
    %v198 = vunpack.c.l.b16 %v65
    %v199 = vunpack.c.l.b16 %v66
    %v200 = vunpack.c.l.b16 %v67
    %v201 = vunpack.c.l.b16 %v68
    %v202 = vunpack.c.l.b16 %v69
    %v203 = vunpack.c.l.b16 %v70
    %v204 = vunpack.c.l.b16 %v71
    %v205 = vunpack.c.l.b16 %v72
    %v206 = vunpack.c.l.b16 %v73
    %v207 = vunpack.c.l.b16 %v74
    %v208 = vunpack.c.l.b16 %v75
    %v209 = vunpack.c.l.b16 %v76
    %v210 = vunpack.c.l.b16 %v77
    %v211 = vunpack.c.l.b16 %v78
    %v212 = vunpack.c.l.b16 %v79
    %v213 = vunpack.c.l.b16 %v80
    %v214 = vpack.c.b16 %v151, %v150
    %v215 = vpack.c.b16 %v153, %v152
    %v216 = vpack.c.b16 %v155, %v154
    %v217 = vpack.c.b16 %v157, %v156
    %v218 = vpack.c.b16 %v159, %v158
    %v219 = vpack.c.b16 %v161, %v160
    %v220 = vpack.c.b16 %v163, %v162
    %v221 = vpack.c.b16 %v165, %v164
    %v222 = vpack.c.b16 %v167, %v166
    %v223 = vpack.c.b16 %v169, %v168
    %v224 = vpack.c.b16 %v171, %v170
    %v225 = vpack.c.b16 %v173, %v172
    %v226 = vpack.c.b16 %v175, %v174
    %v227 = vpack.c.b16 %v177, %v176
    %v228 = vpack.c.b16 %v179, %v178
    %v229 = vpack.c.b16 %v181, %v180
    %v230 = vpack.c.b16 %v183, %v182
    %v231 = vpack.c.b16 %v185, %v184
    %v232 = vpack.c.b16 %v187, %v186
    %v233 = vpack.c.b16 %v189, %v188
    %v234 = vpack.c.b16 %v191, %v190
    %v235 = vpack.c.b16 %v193, %v192
    %v236 = vpack.c.b16 %v195, %v194
    %v237 = vpack.c.b16 %v197, %v196
    %v238 = vpack.c.b16 %v199, %v198
    %v239 = vpack.c.b16 %v201, %v200
    %v240 = vpack.c.b16 %v203, %v202
    %v241 = vpack.c.b16 %v205, %v204
    %v242 = vpack.c.b16 %v207, %v206
    %v243 = vpack.c.b16 %v209, %v208
    %v244 = vpack.c.b16 %v211, %v210
    %v245 = vpack.c.b16 %v213, %v212
    %v251 = vunpack.c.l.b16 %v81
    %v252 = vunpack.c.l.b16 %v82
    %v253 = vunpack.c.l.b16 %v83
    %v254 = vunpack.c.l.b16 %v84
    %v255 = vunpack.c.l.b16 %v85
    %v256 = vpack.c.b16 %v252, %v251
    %v257 = vpack.c.b16 %v254, %v253
    %v258 = vpack.c.b16 %v255, %v255
    %vm261 = vcmask 326656
    %v263 = vsel %vm261, %v214, 0
    %v266 = vsel %vm261, %v215, 0
    %v269 = vsel %vm261, %v216, 0
    %v272 = vsel %vm261, %v217, 0
    %v275 = vsel %vm261, %v218, 0
    %v278 = vsel %vm261, %v219, 0
    %v281 = vsel %vm261, %v220, 0
    %v284 = vsel %vm261, %v221, 0
    %v287 = vsel %vm261, %v222, 0
    %v290 = vsel %vm261, %v223, 0
    %v293 = vsel %vm261, %v224, 0
    %v296 = vsel %vm261, %v225, 0
    %v299 = vsel %vm261, %v226, 0
    %v302 = vsel %vm261, %v227, 0
    %v305 = vsel %vm261, %v228, 0
    %v308 = vsel %vm261, %v229, 0
    %v311 = vsel %vm261, %v230, 0
    %v314 = vsel %vm261, %v231, 0
    %v317 = vsel %vm261, %v232, 0
    %v320 = vsel %vm261, %v233, 0
    %v323 = vsel %vm261, %v234, 0
    %v326 = vsel %vm261, %v235, 0
    %v329 = vsel %vm261, %v236, 0
    %v332 = vsel %vm261, %v237, 0
    %v335 = vsel %vm261, %v238, 0
    %v338 = vsel %vm261, %v239, 0
    %v341 = vsel %vm261, %v240, 0
    %v344 = vsel %vm261, %v241, 0
    %v347 = vsel %vm261, %v242, 0
    %v350 = vsel %vm261, %v243, 0
    %v353 = vsel %vm261, %v244, 0
    %v356 = vsel %vm261, %v245, 0
    %vm358 = vcmask 1043456
    %v360 = vsel %vm358, %v258, 0
    %362 = vmatprep.subr.bf16.mxu0 0
    %363 = vmatpush1.bf16.msra.mxu0 %v256
    %364 = vmatprep.subr.bf16.mxu0 0
    %365 = vmatpush1.bf16.msra.mxu0 %v257
    %366 = vmatprep.subr.bf16.mxu0 0
    %367 = vmatpush1.bf16.msra.mxu0 %v360
    %368 = vmatprep.subr.bf16.mxu0 0
    %369 = vmatpush1.bf16.msra.mxu0 0
    %370 = vmatprep.subr.bf16.mxu0 0
    %371 = vmatpush1.bf16.msra.mxu0 0
    %372 = vmatprep.subr.bf16.mxu0 0
    %373 = vmatpush1.bf16.msra.mxu0 0
    %374 = vmatprep.subr.bf16.mxu0 0
    %375 = vmatpush1.bf16.msra.mxu0 0
    %376 = vmatprep.subr.bf16.mxu0 0
    %377 = vmatpush1.bf16.msra.mxu0 0
    %378 = vmatprep.subr.bf16.mxu0 0
    %379 = vmatpush1.bf16.msra.mxu0 0
    %380 = vmatprep.subr.bf16.mxu0 0
    %381 = vmatpush1.bf16.msra.mxu0 0
    %382 = vmatprep.subr.bf16.mxu0 0
    %383 = vmatpush1.bf16.msra.mxu0 0
    %384 = vmatprep.subr.bf16.mxu0 0
    %385 = vmatpush1.bf16.msra.mxu0 0
    %386 = vmatprep.subr.bf16.mxu0 0
    %387 = vmatpush1.bf16.msra.mxu0 0
    %388 = vmatprep.subr.bf16.mxu0 0
    %389 = vmatpush1.bf16.msra.mxu0 0
    %390 = vmatprep.subr.bf16.mxu0 0
    %391 = vmatpush1.bf16.msra.mxu0 0
    %392 = vmatprep.subr.bf16.mxu0 0
    %393 = vmatpush1.bf16.msra.mxu0 0
    %394 = vmatprep.mubr.bf16.mxu0 0
    %395 = vmatmul.mubr.bf16.gmra.mrb[0].mxu0 %v263
    %v396 = vpop.f32.mrb[0].mxu0
    %v397 = vadd.f32 0.0, %v396
    %v398 = vpop.f32.mrb[0].mxu0
    %v399 = vpop.f32.mrb[0].mxu0
    %v400 = vadd.f32 0.0, %v399
    %v401 = vpop.f32.mrb[0].mxu0
    %402 = vmatprep.mubr.bf16.mxu0 0
    %403 = vmatmul.mubr.bf16.gmra.mrb[0].mxu0 %v266
    %v404 = vpop.f32.mrb[0].mxu0
    %v405 = vadd.f32 0.0, %v404
    %v406 = vpop.f32.mrb[0].mxu0
    %v407 = vpop.f32.mrb[0].mxu0
    %v408 = vadd.f32 0.0, %v407
    %v409 = vpop.f32.mrb[0].mxu0
    %410 = vmatprep.mubr.bf16.mxu0 0
    %411 = vmatmul.mubr.bf16.gmra.mrb[0].mxu0 %v269
    %v412 = vpop.f32.mrb[0].mxu0
    %v413 = vadd.f32 0.0, %v412
    %v414 = vpop.f32.mrb[0].mxu0
    %v415 = vpop.f32.mrb[0].mxu0
    %v416 = vadd.f32 0.0, %v415
    %v417 = vpop.f32.mrb[0].mxu0
    %418 = vmatprep.mubr.bf16.mxu0 0
    %419 = vmatmul.mubr.bf16.gmra.mrb[0].mxu0 %v272
    %v420 = vpop.f32.mrb[0].mxu0
    %v421 = vadd.f32 0.0, %v420
    %v422 = vpop.f32.mrb[0].mxu0
    %v423 = vpop.f32.mrb[0].mxu0
    %v424 = vadd.f32 0.0, %v423
    %v425 = vpop.f32.mrb[0].mxu0
    %426 = vmatprep.mubr.bf16.mxu0 0
    %427 = vmatmul.mubr.bf16.gmra.mrb[0].mxu0 %v275
    %v428 = vpop.f32.mrb[0].mxu0
    %v429 = vadd.f32 0.0, %v428
    %v430 = vpop.f32.mrb[0].mxu0
    %v431 = vpop.f32.mrb[0].mxu0
    %v432 = vadd.f32 0.0, %v431
    %v433 = vpop.f32.mrb[0].mxu0
    %434 = vmatprep.mubr.bf16.mxu0 0
    %435 = vmatmul.mubr.bf16.gmra.mrb[0].mxu0 %v278
    %v436 = vpop.f32.mrb[0].mxu0
    %v437 = vadd.f32 0.0, %v436
    %v438 = vpop.f32.mrb[0].mxu0
    %v439 = vpop.f32.mrb[0].mxu0
    %v440 = vadd.f32 0.0, %v439
    %v441 = vpop.f32.mrb[0].mxu0
    %442 = vmatprep.mubr.bf16.mxu0 0
    %443 = vmatmul.mubr.bf16.gmra.mrb[0].mxu0 %v281
    %v444 = vpop.f32.mrb[0].mxu0
    %v445 = vadd.f32 0.0, %v444
    %v446 = vpop.f32.mrb[0].mxu0
    %v447 = vpop.f32.mrb[0].mxu0
    %v448 = vadd.f32 0.0, %v447
    %v449 = vpop.f32.mrb[0].mxu0
    %450 = vmatprep.mubr.bf16.mxu0 0
    %451 = vmatmul.mubr.bf16.gmra.mrb[0].mxu0 %v284
    %v452 = vpop.f32.mrb[0].mxu0
    %v453 = vadd.f32 0.0, %v452
    %v454 = vpop.f32.mrb[0].mxu0
    %v455 = vpop.f32.mrb[0].mxu0
    %v456 = vadd.f32 0.0, %v455
    %v457 = vpop.f32.mrb[0].mxu0
    %458 = vmatprep.mubr.bf16.mxu0 0
    %459 = vmatmul.mubr.bf16.gmra.mrb[0].mxu0 %v287
    %v460 = vpop.f32.mrb[0].mxu0
    %v461 = vadd.f32 0.0, %v460
    %v462 = vpop.f32.mrb[0].mxu0
    %v463 = vpop.f32.mrb[0].mxu0
    %v464 = vadd.f32 0.0, %v463
    %v465 = vpop.f32.mrb[0].mxu0
    %466 = vmatprep.mubr.bf16.mxu0 0
    %467 = vmatmul.mubr.bf16.gmra.mrb[0].mxu0 %v290
    %v468 = vpop.f32.mrb[0].mxu0
    %v469 = vadd.f32 0.0, %v468
    %v470 = vpop.f32.mrb[0].mxu0
    %v471 = vpop.f32.mrb[0].mxu0
    %v472 = vadd.f32 0.0, %v471
    %v473 = vpop.f32.mrb[0].mxu0
    %474 = vmatprep.mubr.bf16.mxu0 0
    %475 = vmatmul.mubr.bf16.gmra.mrb[0].mxu0 %v293
    %v476 = vpop.f32.mrb[0].mxu0
    %v477 = vadd.f32 0.0, %v476
    %v478 = vpop.f32.mrb[0].mxu0
    %v479 = vpop.f32.mrb[0].mxu0
    %v480 = vadd.f32 0.0, %v479
    %v481 = vpop.f32.mrb[0].mxu0
    %482 = vmatprep.mubr.bf16.mxu0 0
    %483 = vmatmul.mubr.bf16.gmra.mrb[0].mxu0 %v296
    %v484 = vpop.f32.mrb[0].mxu0
    %v485 = vadd.f32 0.0, %v484
    %v486 = vpop.f32.mrb[0].mxu0
    %v487 = vpop.f32.mrb[0].mxu0
    %v488 = vadd.f32 0.0, %v487
    %v489 = vpop.f32.mrb[0].mxu0
    %490 = vmatprep.mubr.bf16.mxu0 0
    %491 = vmatmul.mubr.bf16.gmra.mrb[0].mxu0 %v299
    %v492 = vpop.f32.mrb[0].mxu0
    %v493 = vadd.f32 0.0, %v492
    %v494 = vpop.f32.mrb[0].mxu0
    %v495 = vpop.f32.mrb[0].mxu0
    %v496 = vadd.f32 0.0, %v495
    %v497 = vpop.f32.mrb[0].mxu0
    %498 = vmatprep.mubr.bf16.mxu0 0
    %499 = vmatmul.mubr.bf16.gmra.mrb[0].mxu0 %v302
    %v500 = vpop.f32.mrb[0].mxu0
    %v501 = vadd.f32 0.0, %v500
    %v502 = vpop.f32.mrb[0].mxu0
    %v503 = vpop.f32.mrb[0].mxu0
    %v504 = vadd.f32 0.0, %v503
    %v505 = vpop.f32.mrb[0].mxu0
    %506 = vmatprep.mubr.bf16.mxu0 0
    %507 = vmatmul.mubr.bf16.gmra.mrb[0].mxu0 %v305
    %v508 = vpop.f32.mrb[0].mxu0
    %v509 = vadd.f32 0.0, %v508
    %v510 = vpop.f32.mrb[0].mxu0
    %v511 = vpop.f32.mrb[0].mxu0
    %v512 = vadd.f32 0.0, %v511
    %v513 = vpop.f32.mrb[0].mxu0
    %514 = vmatprep.mubr.bf16.mxu0 0
    %515 = vmatmul.mubr.bf16.gmra.mrb[0].mxu0 %v308
    %v516 = vpop.f32.mrb[0].mxu0
    %v517 = vadd.f32 0.0, %v516
    %v518 = vpop.f32.mrb[0].mxu0
    %v519 = vpop.f32.mrb[0].mxu0
    %v520 = vadd.f32 0.0, %v519
    %v521 = vpop.f32.mrb[0].mxu0
    %522 = vmatprep.mubr.bf16.mxu0 0
    %523 = vmatmul.mubr.bf16.gmra.mrb[0].mxu0 %v311
    %v524 = vpop.f32.mrb[0].mxu0
    %v525 = vadd.f32 0.0, %v524
    %v526 = vpop.f32.mrb[0].mxu0
    %v527 = vpop.f32.mrb[0].mxu0
    %v528 = vadd.f32 0.0, %v527
    %v529 = vpop.f32.mrb[0].mxu0
    %530 = vmatprep.mubr.bf16.mxu0 0
    %531 = vmatmul.mubr.bf16.gmra.mrb[0].mxu0 %v314
    %v532 = vpop.f32.mrb[0].mxu0
    %v533 = vadd.f32 0.0, %v532
    %v534 = vpop.f32.mrb[0].mxu0
    %v535 = vpop.f32.mrb[0].mxu0
    %v536 = vadd.f32 0.0, %v535
    %v537 = vpop.f32.mrb[0].mxu0
    %538 = vmatprep.mubr.bf16.mxu0 0
    %539 = vmatmul.mubr.bf16.gmra.mrb[0].mxu0 %v317
    %v540 = vpop.f32.mrb[0].mxu0
    %v541 = vadd.f32 0.0, %v540
    %v542 = vpop.f32.mrb[0].mxu0
    %v543 = vpop.f32.mrb[0].mxu0
    %v544 = vadd.f32 0.0, %v543
    %v545 = vpop.f32.mrb[0].mxu0
    %546 = vmatprep.mubr.bf16.mxu0 0
    %547 = vmatmul.mubr.bf16.gmra.mrb[0].mxu0 %v320
    %v548 = vpop.f32.mrb[0].mxu0
    %v549 = vadd.f32 0.0, %v548
    %v550 = vpop.f32.mrb[0].mxu0
    %v551 = vpop.f32.mrb[0].mxu0
    %v552 = vadd.f32 0.0, %v551
    %v553 = vpop.f32.mrb[0].mxu0
    %554 = vmatprep.mubr.bf16.mxu0 0
    %555 = vmatmul.mubr.bf16.gmra.mrb[0].mxu0 %v323
    %v556 = vpop.f32.mrb[0].mxu0
    %v557 = vadd.f32 0.0, %v556
    %v558 = vpop.f32.mrb[0].mxu0
    %v559 = vpop.f32.mrb[0].mxu0
    %v560 = vadd.f32 0.0, %v559
    %v561 = vpop.f32.mrb[0].mxu0
    %562 = vmatprep.mubr.bf16.mxu0 0
    %563 = vmatmul.mubr.bf16.gmra.mrb[0].mxu0 %v326
    %v564 = vpop.f32.mrb[0].mxu0
    %v565 = vadd.f32 0.0, %v564
    %v566 = vpop.f32.mrb[0].mxu0
    %v567 = vpop.f32.mrb[0].mxu0
    %v568 = vadd.f32 0.0, %v567
    %v569 = vpop.f32.mrb[0].mxu0
    %570 = vmatprep.mubr.bf16.mxu0 0
    %571 = vmatmul.mubr.bf16.gmra.mrb[0].mxu0 %v329
    %v572 = vpop.f32.mrb[0].mxu0
    %v573 = vadd.f32 0.0, %v572
    %v574 = vpop.f32.mrb[0].mxu0
    %v575 = vpop.f32.mrb[0].mxu0
    %v576 = vadd.f32 0.0, %v575
    %v577 = vpop.f32.mrb[0].mxu0
    %578 = vmatprep.mubr.bf16.mxu0 0
    %579 = vmatmul.mubr.bf16.gmra.mrb[0].mxu0 %v332
    %v580 = vpop.f32.mrb[0].mxu0
    %v581 = vadd.f32 0.0, %v580
    %v582 = vpop.f32.mrb[0].mxu0
    %v583 = vpop.f32.mrb[0].mxu0
    %v584 = vadd.f32 0.0, %v583
    %v585 = vpop.f32.mrb[0].mxu0
    %586 = vmatprep.mubr.bf16.mxu0 0
    %587 = vmatmul.mubr.bf16.gmra.mrb[0].mxu0 %v335
    %v588 = vpop.f32.mrb[0].mxu0
    %v589 = vadd.f32 0.0, %v588
    %v590 = vpop.f32.mrb[0].mxu0
    %v591 = vpop.f32.mrb[0].mxu0
    %v592 = vadd.f32 0.0, %v591
    %v593 = vpop.f32.mrb[0].mxu0
    %594 = vmatprep.mubr.bf16.mxu0 0
    %595 = vmatmul.mubr.bf16.gmra.mrb[0].mxu0 %v338
    %v596 = vpop.f32.mrb[0].mxu0
    %v597 = vadd.f32 0.0, %v596
    %v598 = vpop.f32.mrb[0].mxu0
    %v599 = vpop.f32.mrb[0].mxu0
    %v600 = vadd.f32 0.0, %v599
    %v601 = vpop.f32.mrb[0].mxu0
    %602 = vmatprep.mubr.bf16.mxu0 0
    %603 = vmatmul.mubr.bf16.gmra.mrb[0].mxu0 %v341
    %v604 = vpop.f32.mrb[0].mxu0
    %v605 = vadd.f32 0.0, %v604
    %v606 = vpop.f32.mrb[0].mxu0
    %v607 = vpop.f32.mrb[0].mxu0
    %v608 = vadd.f32 0.0, %v607
    %v609 = vpop.f32.mrb[0].mxu0
    %610 = vmatprep.mubr.bf16.mxu0 0
    %611 = vmatmul.mubr.bf16.gmra.mrb[0].mxu0 %v344
    %v612 = vpop.f32.mrb[0].mxu0
    %v613 = vadd.f32 0.0, %v612
    %v614 = vpop.f32.mrb[0].mxu0
    %v615 = vpop.f32.mrb[0].mxu0
    %v616 = vadd.f32 0.0, %v615
    %v617 = vpop.f32.mrb[0].mxu0
    %618 = vmatprep.mubr.bf16.mxu0 0
    %619 = vmatmul.mubr.bf16.gmra.mrb[0].mxu0 %v347
    %v620 = vpop.f32.mrb[0].mxu0
    %v621 = vadd.f32 0.0, %v620
    %v622 = vpop.f32.mrb[0].mxu0
    %v623 = vpop.f32.mrb[0].mxu0
    %v624 = vadd.f32 0.0, %v623
    %v625 = vpop.f32.mrb[0].mxu0
    %626 = vmatprep.mubr.bf16.mxu0 0
    %627 = vmatmul.mubr.bf16.gmra.mrb[0].mxu0 %v350
    %v628 = vpop.f32.mrb[0].mxu0
    %v629 = vadd.f32 0.0, %v628
    %v630 = vpop.f32.mrb[0].mxu0
    %v631 = vpop.f32.mrb[0].mxu0
    %v632 = vadd.f32 0.0, %v631
    %v633 = vpop.f32.mrb[0].mxu0
    %634 = vmatprep.mubr.bf16.mxu0 0
    %635 = vmatmul.mubr.bf16.gmra.mrb[0].mxu0 %v353
    %v636 = vpop.f32.mrb[0].mxu0
    %v637 = vadd.f32 0.0, %v636
    %v638 = vpop.f32.mrb[0].mxu0
    %v639 = vpop.f32.mrb[0].mxu0
    %v640 = vadd.f32 0.0, %v639
    %v641 = vpop.f32.mrb[0].mxu0
    %642 = vmatprep.mubr.bf16.mxu0 0
    %643 = vmatmul.mubr.bf16.gmra.mrb[0].mxu0 %v356
    %v644 = vpop.f32.mrb[0].mxu0
    %v645 = vadd.f32 0.0, %v644
    %v646 = vpop.f32.mrb[0].mxu0
    %v647 = vpop.f32.mrb[0].mxu0
    %v648 = vadd.f32 0.0, %v647
    %v649 = vpop.f32.mrb[0].mxu0
    %650 = vdwg.mxu0
    %v651 = vpack.c.bf16 %v400, %v397
    %v652 = vpack.c.bf16 %v408, %v405
    %v653 = vpack.c.bf16 %v416, %v413
    %v654 = vpack.c.bf16 %v424, %v421
    %v655 = vpack.c.bf16 %v432, %v429
    %v656 = vpack.c.bf16 %v440, %v437
    %v657 = vpack.c.bf16 %v448, %v445
    %v658 = vpack.c.bf16 %v456, %v453
    %v659 = vpack.c.bf16 %v464, %v461
    %v660 = vpack.c.bf16 %v472, %v469
    %v661 = vpack.c.bf16 %v480, %v477
    %v662 = vpack.c.bf16 %v488, %v485
    %v663 = vpack.c.bf16 %v496, %v493
    %v664 = vpack.c.bf16 %v504, %v501
    %v665 = vpack.c.bf16 %v512, %v509
    %v666 = vpack.c.bf16 %v520, %v517
    %v667 = vpack.c.bf16 %v528, %v525
    %v668 = vpack.c.bf16 %v536, %v533
    %v669 = vpack.c.bf16 %v544, %v541
    %v670 = vpack.c.bf16 %v552, %v549
    %v671 = vpack.c.bf16 %v560, %v557
    %v672 = vpack.c.bf16 %v568, %v565
    %v673 = vpack.c.bf16 %v576, %v573
    %v674 = vpack.c.bf16 %v584, %v581
    %v675 = vpack.c.bf16 %v592, %v589
    %v676 = vpack.c.bf16 %v600, %v597
    %v677 = vpack.c.bf16 %v608, %v605
    %v678 = vpack.c.bf16 %v616, %v613
    %v679 = vpack.c.bf16 %v624, %v621
    %v680 = vpack.c.bf16 %v632, %v629
    %v681 = vpack.c.bf16 %v640, %v637
    %v682 = vpack.c.bf16 %v648, %v645
    %v715 = vunpack.c.l.b16 %v651
    %v716 = vunpack.c.h.b16 %v651
    %v717 = vunpack.c.l.b16 %v652
    %v718 = vunpack.c.h.b16 %v652
    %v719 = vunpack.c.l.b16 %v653
    %v720 = vunpack.c.h.b16 %v653
    %v721 = vunpack.c.l.b16 %v654
    %v722 = vunpack.c.h.b16 %v654
    %v723 = vunpack.c.l.b16 %v655
    %v724 = vunpack.c.h.b16 %v655
    %v725 = vunpack.c.l.b16 %v656
    %v726 = vunpack.c.h.b16 %v656
    %v727 = vunpack.c.l.b16 %v657
    %v728 = vunpack.c.h.b16 %v657
    %v729 = vunpack.c.l.b16 %v658
    %v730 = vunpack.c.h.b16 %v658
    %v731 = vunpack.c.l.b16 %v659
    %v732 = vunpack.c.h.b16 %v659
    %v733 = vunpack.c.l.b16 %v660
    %v734 = vunpack.c.h.b16 %v660
    %v735 = vunpack.c.l.b16 %v661
    %v736 = vunpack.c.h.b16 %v661
    %v737 = vunpack.c.l.b16 %v662
    %v738 = vunpack.c.h.b16 %v662
    %v739 = vunpack.c.l.b16 %v663
    %v740 = vunpack.c.h.b16 %v663
    %v741 = vunpack.c.l.b16 %v664
    %v742 = vunpack.c.h.b16 %v664
    %v743 = vunpack.c.l.b16 %v665
    %v744 = vunpack.c.h.b16 %v665
    %v745 = vunpack.c.l.b16 %v666
    %v746 = vunpack.c.h.b16 %v666
    %v747 = vunpack.c.l.b16 %v667
    %v748 = vunpack.c.h.b16 %v667
    %v749 = vunpack.c.l.b16 %v668
    %v750 = vunpack.c.h.b16 %v668
    %v751 = vunpack.c.l.b16 %v669
    %v752 = vunpack.c.h.b16 %v669
    %v753 = vunpack.c.l.b16 %v670
    %v754 = vunpack.c.h.b16 %v670
    %v755 = vunpack.c.l.b16 %v671
    %v756 = vunpack.c.h.b16 %v671
    %v757 = vunpack.c.l.b16 %v672
    %v758 = vunpack.c.h.b16 %v672
    %v759 = vunpack.c.l.b16 %v673
    %v760 = vunpack.c.h.b16 %v673
    %v761 = vunpack.c.l.b16 %v674
    %v762 = vunpack.c.h.b16 %v674
    %v763 = vunpack.c.l.b16 %v675
    %v764 = vunpack.c.h.b16 %v675
    %v765 = vunpack.c.l.b16 %v676
    %v766 = vunpack.c.h.b16 %v676
    %v767 = vunpack.c.l.b16 %v677
    %v768 = vunpack.c.h.b16 %v677
    %v769 = vunpack.c.l.b16 %v678
    %v770 = vunpack.c.h.b16 %v678
    %v771 = vunpack.c.l.b16 %v679
    %v772 = vunpack.c.h.b16 %v679
    %v773 = vunpack.c.l.b16 %v680
    %v774 = vunpack.c.h.b16 %v680
    %v775 = vunpack.c.l.b16 %v681
    %v776 = vunpack.c.h.b16 %v681
    %v777 = vunpack.c.l.b16 %v682
    %v778 = vunpack.c.h.b16 %v682
    %v779 = vpack.c.b16 %v715, %v715
    %v780 = vpack.c.b16 %v716, %v716
    %v781 = vpack.c.b16 %v717, %v717
    %v782 = vpack.c.b16 %v718, %v718
    %v783 = vpack.c.b16 %v719, %v719
    %v784 = vpack.c.b16 %v720, %v720
    %v785 = vpack.c.b16 %v721, %v721
    %v786 = vpack.c.b16 %v722, %v722
    %v787 = vpack.c.b16 %v723, %v723
    %v788 = vpack.c.b16 %v724, %v724
    %v789 = vpack.c.b16 %v725, %v725
    %v790 = vpack.c.b16 %v726, %v726
    %v791 = vpack.c.b16 %v727, %v727
    %v792 = vpack.c.b16 %v728, %v728
    %v793 = vpack.c.b16 %v729, %v729
    %v794 = vpack.c.b16 %v730, %v730
    %v795 = vpack.c.b16 %v731, %v731
    %v796 = vpack.c.b16 %v732, %v732
    %v797 = vpack.c.b16 %v733, %v733
    %v798 = vpack.c.b16 %v734, %v734
    %v799 = vpack.c.b16 %v735, %v735
    %v800 = vpack.c.b16 %v736, %v736
    %v801 = vpack.c.b16 %v737, %v737
    %v802 = vpack.c.b16 %v738, %v738
    %v803 = vpack.c.b16 %v739, %v739
    %v804 = vpack.c.b16 %v740, %v740
    %v805 = vpack.c.b16 %v741, %v741
    %v806 = vpack.c.b16 %v742, %v742
    %v807 = vpack.c.b16 %v743, %v743
    %v808 = vpack.c.b16 %v744, %v744
    %v809 = vpack.c.b16 %v745, %v745
    %v810 = vpack.c.b16 %v746, %v746
    %v811 = vpack.c.b16 %v747, %v747
    %v812 = vpack.c.b16 %v748, %v748
    %v813 = vpack.c.b16 %v749, %v749
    %v814 = vpack.c.b16 %v750, %v750
    %v815 = vpack.c.b16 %v751, %v751
    %v816 = vpack.c.b16 %v752, %v752
    %v817 = vpack.c.b16 %v753, %v753
    %v818 = vpack.c.b16 %v754, %v754
    %v819 = vpack.c.b16 %v755, %v755
    %v820 = vpack.c.b16 %v756, %v756
    %v821 = vpack.c.b16 %v757, %v757
    %v822 = vpack.c.b16 %v758, %v758
    %v823 = vpack.c.b16 %v759, %v759
    %v824 = vpack.c.b16 %v760, %v760
    %v825 = vpack.c.b16 %v761, %v761
    %v826 = vpack.c.b16 %v762, %v762
    %v827 = vpack.c.b16 %v763, %v763
    %v828 = vpack.c.b16 %v764, %v764
    %v829 = vpack.c.b16 %v765, %v765
    %v830 = vpack.c.b16 %v766, %v766
    %v831 = vpack.c.b16 %v767, %v767
    %v832 = vpack.c.b16 %v768, %v768
    %v833 = vpack.c.b16 %v769, %v769
    %v834 = vpack.c.b16 %v770, %v770
    %v835 = vpack.c.b16 %v771, %v771
    %v836 = vpack.c.b16 %v772, %v772
    %v837 = vpack.c.b16 %v773, %v773
    %v838 = vpack.c.b16 %v774, %v774
    %v839 = vpack.c.b16 %v775, %v775
    %v840 = vpack.c.b16 %v776, %v776
    %v841 = vpack.c.b16 %v777, %v777
    %v842 = vpack.c.b16 %v778, %v778
    %907 = vst [vmem:[#allocation2] sm:$0xf] %v779
    %908 = vst [vmem:[#allocation2 + $0x4] sm:$0xf] %v780
    %909 = vst [vmem:[#allocation2 + $0x8] sm:$0xf] %v781
    %910 = vst [vmem:[#allocation2 + $0xc] sm:$0xf] %v782
    %911 = vst [vmem:[#allocation2 + $0x10] sm:$0xf] %v783
    %912 = vst [vmem:[#allocation2 + $0x14] sm:$0xf] %v784
    %913 = vst [vmem:[#allocation2 + $0x18] sm:$0xf] %v785
    %914 = vst [vmem:[#allocation2 + $0x1c] sm:$0xf] %v786
    %915 = vst [vmem:[#allocation2 + $0x20] sm:$0xf] %v787
    %916 = vst [vmem:[#allocation2 + $0x24] sm:$0xf] %v788
    %917 = vst [vmem:[#allocation2 + $0x28] sm:$0xf] %v789
    %918 = vst [vmem:[#allocation2 + $0x2c] sm:$0xf] %v790
    %919 = vst [vmem:[#allocation2 + $0x30] sm:$0xf] %v791
    %920 = vst [vmem:[#allocation2 + $0x34] sm:$0xf] %v792
    %921 = vst [vmem:[#allocation2 + $0x38] sm:$0xf] %v793
    %922 = vst [vmem:[#allocation2 + $0x3c] sm:$0xf] %v794
    %923 = vst [vmem:[#allocation2 + $0x40] sm:$0xf] %v795
    %924 = vst [vmem:[#allocation2 + $0x44] sm:$0xf] %v796
    %925 = vst [vmem:[#allocation2 + $0x48] sm:$0xf] %v797
    %926 = vst [vmem:[#allocation2 + $0x4c] sm:$0xf] %v798
    %927 = vst [vmem:[#allocation2 + $0x50] sm:$0xf] %v799
    %928 = vst [vmem:[#allocation2 + $0x54] sm:$0xf] %v800
    %929 = vst [vmem:[#allocation2 + $0x58] sm:$0xf] %v801
    %930 = vst [vmem:[#allocation2 + $0x5c] sm:$0xf] %v802
    %931 = vst [vmem:[#allocation2 + $0x60] sm:$0xf] %v803
    %932 = vst [vmem:[#allocation2 + $0x64] sm:$0xf] %v804
    %933 = vst [vmem:[#allocation2 + $0x68] sm:$0xf] %v805
    %934 = vst [vmem:[#allocation2 + $0x6c] sm:$0xf] %v806
    %935 = vst [vmem:[#allocation2 + $0x70] sm:$0xf] %v807
    %936 = vst [vmem:[#allocation2 + $0x74] sm:$0xf] %v808
    %937 = vst [vmem:[#allocation2 + $0x78] sm:$0xf] %v809
    %938 = vst [vmem:[#allocation2 + $0x7c] sm:$0xf] %v810
    %939 = vst [vmem:[#allocation2 + $0x80] sm:$0xf] %v811
    %940 = vst [vmem:[#allocation2 + $0x84] sm:$0xf] %v812
    %941 = vst [vmem:[#allocation2 + $0x88] sm:$0xf] %v813
    %942 = vst [vmem:[#allocation2 + $0x8c] sm:$0xf] %v814
    %943 = vst [vmem:[#allocation2 + $0x90] sm:$0xf] %v815
    %944 = vst [vmem:[#allocation2 + $0x94] sm:$0xf] %v816
    %945 = vst [vmem:[#allocation2 + $0x98] sm:$0xf] %v817
    %946 = vst [vmem:[#allocation2 + $0x9c] sm:$0xf] %v818
    %947 = vst [vmem:[#allocation2 + $0xa0] sm:$0xf] %v819
    %948 = vst [vmem:[#allocation2 + $0xa4] sm:$0xf] %v820
    %949 = vst [vmem:[#allocation2 + $0xa8] sm:$0xf] %v821
    %950 = vst [vmem:[#allocation2 + $0xac] sm:$0xf] %v822
    %951 = vst [vmem:[#allocation2 + $0xb0] sm:$0xf] %v823
    %952 = vst [vmem:[#allocation2 + $0xb4] sm:$0xf] %v824
    %953 = vst [vmem:[#allocation2 + $0xb8] sm:$0xf] %v825
    %954 = vst [vmem:[#allocation2 + $0xbc] sm:$0xf] %v826
    %955 = vst [vmem:[#allocation2 + $0xc0] sm:$0xf] %v827
    %956 = vst [vmem:[#allocation2 + $0xc4] sm:$0xf] %v828
    %957 = vst [vmem:[#allocation2 + $0xc8] sm:$0xf] %v829
    %958 = vst [vmem:[#allocation2 + $0xcc] sm:$0xf] %v830
    %959 = vst [vmem:[#allocation2 + $0xd0] sm:$0xf] %v831
    %960 = vst [vmem:[#allocation2 + $0xd4] sm:$0xf] %v832
    %961 = vst [vmem:[#allocation2 + $0xd8] sm:$0xf] %v833
    %962 = vst [vmem:[#allocation2 + $0xdc] sm:$0xf] %v834
    %963 = vst [vmem:[#allocation2 + $0xe0] sm:$0xf] %v835
    %964 = vst [vmem:[#allocation2 + $0xe4] sm:$0xf] %v836
    %965 = vst [vmem:[#allocation2 + $0xe8] sm:$0xf] %v837
    %966 = vst [vmem:[#allocation2 + $0xec] sm:$0xf] %v838
    %967 = vst [vmem:[#allocation2 + $0xf0] sm:$0xf] %v839
    %968 = vst [vmem:[#allocation2 + $0xf4] sm:$0xf] %v840
    %969 = vst [vmem:[#allocation2 + $0xf8] sm:$0xf] %v841
    %970 = vst [vmem:[#allocation2 + $0xfc] sm:$0xf] %v842
    %v971 = vadd.f32 %v397, %v400
    %v972 = vadd.f32 %v971, %v405
    %v973 = vadd.f32 %v972, %v408
    %v974 = vadd.f32 %v973, %v413
    %v975 = vadd.f32 %v974, %v416
    %v976 = vadd.f32 %v975, %v421
    %v977 = vadd.f32 %v976, %v424
    %v978 = vadd.f32 %v977, %v429
    %v979 = vadd.f32 %v978, %v432
    %v980 = vadd.f32 %v979, %v437
    %v981 = vadd.f32 %v980, %v440
    %v982 = vadd.f32 %v981, %v445
    %v983 = vadd.f32 %v982, %v448
    %v984 = vadd.f32 %v983, %v453
    %v985 = vadd.f32 %v984, %v456
    %v986 = vadd.f32 %v985, %v461
    %v987 = vadd.f32 %v986, %v464
    %v988 = vadd.f32 %v987, %v469
    %v989 = vadd.f32 %v988, %v472
    %v990 = vadd.f32 %v989, %v477
    %v991 = vadd.f32 %v990, %v480
    %v992 = vadd.f32 %v991, %v485
    %v993 = vadd.f32 %v992, %v488
    %v994 = vadd.f32 %v993, %v493
    %v995 = vadd.f32 %v994, %v496
    %v996 = vadd.f32 %v995, %v501
    %v997 = vadd.f32 %v996, %v504
    %v998 = vadd.f32 %v997, %v509
    %v999 = vadd.f32 %v998, %v512
    %v1000 = vadd.f32 %v999, %v517
    %v1001 = vadd.f32 %v1000, %v520
    %v1002 = vadd.f32 %v1001, %v525
    %v1003 = vadd.f32 %v1002, %v528
    %v1004 = vadd.f32 %v1003, %v533
    %v1005 = vadd.f32 %v1004, %v536
    %v1006 = vadd.f32 %v1005, %v541
    %v1007 = vadd.f32 %v1006, %v544
    %v1008 = vadd.f32 %v1007, %v549
    %v1009 = vadd.f32 %v1008, %v552
    %v1010 = vadd.f32 %v1009, %v557
    %v1011 = vadd.f32 %v1010, %v560
    %v1012 = vadd.f32 %v1011, %v565
    %v1013 = vadd.f32 %v1012, %v568
    %v1014 = vadd.f32 %v1013, %v573
    %v1015 = vadd.f32 %v1014, %v576
    %v1016 = vadd.f32 %v1015, %v581
    %v1017 = vadd.f32 %v1016, %v584
    %v1018 = vadd.f32 %v1017, %v589
    %v1019 = vadd.f32 %v1018, %v592
    %v1020 = vadd.f32 %v1019, %v597
    %v1021 = vadd.f32 %v1020, %v600
    %v1022 = vadd.f32 %v1021, %v605
    %v1023 = vadd.f32 %v1022, %v608
    %v1024 = vadd.f32 %v1023, %v613
    %v1025 = vadd.f32 %v1024, %v616
    %v1026 = vadd.f32 %v1025, %v621
    %v1027 = vadd.f32 %v1026, %v624
    %v1028 = vadd.f32 %v1027, %v629
    %v1029 = vadd.f32 %v1028, %v632
    %v1030 = vadd.f32 %v1029, %v637
    %v1031 = vadd.f32 %v1030, %v640
    %v1032 = vadd.f32 %v1031, %v645
    %v1033 = vadd.f32 %v1032, %v648
    %v1034 = vrot.slane %v1033, 4
    %v1035 = vadd.f32 %v1033, %v1034
    %v1036 = vrot.slane %v1035, 2
    %v1037 = vadd.f32 %v1035, %v1036
    %v1038 = vrot.slane %v1037, 1
    %v1039 = vadd.f32 %v1037, %v1038
    %v1040 = vmul.f32 %v397, %v397
    %v1041 = vmul.f32 %v400, %v400
    %v1042 = vmul.f32 %v405, %v405
    %v1043 = vmul.f32 %v408, %v408
    %v1044 = vmul.f32 %v413, %v413
    %v1045 = vmul.f32 %v416, %v416
    %v1046 = vmul.f32 %v421, %v421
    %v1047 = vmul.f32 %v424, %v424
    %v1048 = vmul.f32 %v429, %v429
    %v1049 = vmul.f32 %v432, %v432
    %v1050 = vmul.f32 %v437, %v437
    %v1051 = vmul.f32 %v440, %v440
    %v1052 = vmul.f32 %v445, %v445
    %v1053 = vmul.f32 %v448, %v448
    %v1054 = vmul.f32 %v453, %v453
    %v1055 = vmul.f32 %v456, %v456
    %v1056 = vmul.f32 %v461, %v461
    %v1057 = vmul.f32 %v464, %v464
    %v1058 = vmul.f32 %v469, %v469
    %v1059 = vmul.f32 %v472, %v472
    %v1060 = vmul.f32 %v477, %v477
    %v1061 = vmul.f32 %v480, %v480
    %v1062 = vmul.f32 %v485, %v485
    %v1063 = vmul.f32 %v488, %v488
    %v1064 = vmul.f32 %v493, %v493
    %v1065 = vmul.f32 %v496, %v496
    %v1066 = vmul.f32 %v501, %v501
    %v1067 = vmul.f32 %v504, %v504
    %v1068 = vmul.f32 %v509, %v509
    %v1069 = vmul.f32 %v512, %v512
    %v1070 = vmul.f32 %v517, %v517
    %v1071 = vmul.f32 %v520, %v520
    %v1072 = vmul.f32 %v525, %v525
    %v1073 = vmul.f32 %v528, %v528
    %v1074 = vmul.f32 %v533, %v533
    %v1075 = vmul.f32 %v536, %v536
    %v1076 = vmul.f32 %v541, %v541
    %v1077 = vmul.f32 %v544, %v544
    %v1078 = vmul.f32 %v549, %v549
    %v1079 = vmul.f32 %v552, %v552
    %v1080 = vmul.f32 %v557, %v557
    %v1081 = vmul.f32 %v560, %v560
    %v1082 = vmul.f32 %v565, %v565
    %v1083 = vmul.f32 %v568, %v568
    %v1084 = vmul.f32 %v573, %v573
    %v1085 = vmul.f32 %v576, %v576
    %v1086 = vmul.f32 %v581, %v581
    %v1087 = vmul.f32 %v584, %v584
    %v1088 = vmul.f32 %v589, %v589
    %v1089 = vmul.f32 %v592, %v592
    %v1090 = vmul.f32 %v597, %v597
    %v1091 = vmul.f32 %v600, %v600
    %v1092 = vmul.f32 %v605, %v605
    %v1093 = vmul.f32 %v608, %v608
    %v1094 = vmul.f32 %v613, %v613
    %v1095 = vmul.f32 %v616, %v616
    %v1096 = vmul.f32 %v621, %v621
    %v1097 = vmul.f32 %v624, %v624
    %v1098 = vmul.f32 %v629, %v629
    %v1099 = vmul.f32 %v632, %v632
    %v1100 = vmul.f32 %v637, %v637
    %v1101 = vmul.f32 %v640, %v640
    %v1102 = vmul.f32 %v645, %v645
    %v1103 = vmul.f32 %v648, %v648
    %v1104 = vadd.f32 %v1040, %v1041
    %v1105 = vadd.f32 %v1104, %v1042
    %v1106 = vadd.f32 %v1105, %v1043
    %v1107 = vadd.f32 %v1106, %v1044
    %v1108 = vadd.f32 %v1107, %v1045
    %v1109 = vadd.f32 %v1108, %v1046
    %v1110 = vadd.f32 %v1109, %v1047
    %v1111 = vadd.f32 %v1110, %v1048
    %v1112 = vadd.f32 %v1111, %v1049
    %v1113 = vadd.f32 %v1112, %v1050
    %v1114 = vadd.f32 %v1113, %v1051
    %v1115 = vadd.f32 %v1114, %v1052
    %v1116 = vadd.f32 %v1115, %v1053
    %v1117 = vadd.f32 %v1116, %v1054
    %v1118 = vadd.f32 %v1117, %v1055
    %v1119 = vadd.f32 %v1118, %v1056
    %v1120 = vadd.f32 %v1119, %v1057
    %v1121 = vadd.f32 %v1120, %v1058
    %v1122 = vadd.f32 %v1121, %v1059
    %v1123 = vadd.f32 %v1122, %v1060
    %v1124 = vadd.f32 %v1123, %v1061
    %v1125 = vadd.f32 %v1124, %v1062
    %v1126 = vadd.f32 %v1125, %v1063
    %v1127 = vadd.f32 %v1126, %v1064
    %v1128 = vadd.f32 %v1127, %v1065
    %v1129 = vadd.f32 %v1128, %v1066
    %v1130 = vadd.f32 %v1129, %v1067
    %v1131 = vadd.f32 %v1130, %v1068
    %v1132 = vadd.f32 %v1131, %v1069
    %v1133 = vadd.f32 %v1132, %v1070
    %v1134 = vadd.f32 %v1133, %v1071
    %v1135 = vadd.f32 %v1134, %v1072
    %v1136 = vadd.f32 %v1135, %v1073
    %v1137 = vadd.f32 %v1136, %v1074
    %v1138 = vadd.f32 %v1137, %v1075
    %v1139 = vadd.f32 %v1138, %v1076
    %v1140 = vadd.f32 %v1139, %v1077
    %v1141 = vadd.f32 %v1140, %v1078
    %v1142 = vadd.f32 %v1141, %v1079
    %v1143 = vadd.f32 %v1142, %v1080
    %v1144 = vadd.f32 %v1143, %v1081
    %v1145 = vadd.f32 %v1144, %v1082
    %v1146 = vadd.f32 %v1145, %v1083
    %v1147 = vadd.f32 %v1146, %v1084
    %v1148 = vadd.f32 %v1147, %v1085
    %v1149 = vadd.f32 %v1148, %v1086
    %v1150 = vadd.f32 %v1149, %v1087
    %v1151 = vadd.f32 %v1150, %v1088
    %v1152 = vadd.f32 %v1151, %v1089
    %v1153 = vadd.f32 %v1152, %v1090
    %v1154 = vadd.f32 %v1153, %v1091
    %v1155 = vadd.f32 %v1154, %v1092
    %v1156 = vadd.f32 %v1155, %v1093
    %v1157 = vadd.f32 %v1156, %v1094
    %v1158 = vadd.f32 %v1157, %v1095
    %v1159 = vadd.f32 %v1158, %v1096
    %v1160 = vadd.f32 %v1159, %v1097
    %v1161 = vadd.f32 %v1160, %v1098
    %v1162 = vadd.f32 %v1161, %v1099
    %v1163 = vadd.f32 %v1162, %v1100
    %v1164 = vadd.f32 %v1163, %v1101
    %v1165 = vadd.f32 %v1164, %v1102
    %v1166 = vadd.f32 %v1165, %v1103
    %v1167 = vrot.slane %v1166, 4
    %v1168 = vadd.f32 %v1166, %v1167
    %v1169 = vrot.slane %v1168, 2
    %v1170 = vadd.f32 %v1168, %v1169
    %v1171 = vrot.slane %v1170, 1
    %v1172 = vadd.f32 %v1170, %v1171
    %1173 = vst [vmem:[#allocation4] sm:$0xff] %v1039
    %1174 = vst [vmem:[#allocation6] sm:$0xff] %v1172
    // Predicated region
    $region10: #{tpu_custom_call.1} parent=1 // pred_check
      _
    $region11: #{tpu_custom_call.1} parent=1 // pred_check_branch
      %1176 = sbr.rel (0) target = $region13
    $region12: #{tpu_custom_call.1} parent=1 // pred_region
      %s1178 = ssub.s32 4096, 4096
      %1179 = vsyncadd [#allocation3], %s1178
      %s1180 = sshll.u32 [#allocation2], 4
      %s1181 = int_to_ptr.vmem [resolvable:$true] %s1180
      %1186 = dma.vmem_to_hbm [thread:$0]  %s1181, 4096, %s2, [#allocation3], 64, 64, 4
    $region13: #{tpu_custom_call.1} parent=1 // pred_fallthru
      _
    // Predicated region
    $region14: #{tpu_custom_call.1} parent=1 // pred_check
      _
    $region15: #{tpu_custom_call.1} parent=1 // pred_check_branch
      %1188 = sbr.rel (0) target = $region17
    $region16: #{tpu_custom_call.1} parent=1 // pred_region
      %s1190 = ssub.s32 128, 128
      %1191 = vsyncadd [#allocation5], %s1190
      %s1193 = sshll.u32 [#allocation4], 4
      %s1194 = int_to_ptr.vmem [resolvable:$true] %s1193
      %1196 = dma.vmem_to_hbm [thread:$0]  %s1194, 128, %s3, [#allocation5]
    $region17: #{tpu_custom_call.1} parent=1 // pred_fallthru
      _
    // Predicated region
    $region18: #{tpu_custom_call.1} parent=1 // pred_check
      _
    $region19: #{tpu_custom_call.1} parent=1 // pred_check_branch
      %1198 = sbr.rel (0) target = $region21
    $region20: #{tpu_custom_call.1} parent=1 // pred_region
      %s1200 = ssub.s32 128, 128
      %1201 = vsyncadd [#allocation5], %s1200
      %s1203 = sshll.u32 [#allocation6], 4
      %s1204 = int_to_ptr.vmem [resolvable:$true] %s1203
      %1206 = dma.vmem_to_hbm [thread:$0]  %s1204, 128, %s4, [#allocation5]
    $region21: #{tpu_custom_call.1} parent=1 // pred_fallthru
      _
    // Predicated region
    $region22: #{tpu_custom_call.1} parent=1 // pred_check
      _
    $region23: #{tpu_custom_call.1} parent=1 // pred_check_branch
      %1208 = sbr.rel (0) target = $region25
    $region24: #{tpu_custom_call.1} parent=1 // pred_region
      %1209 = dma.done [#allocation3], 4096
    $region25: #{tpu_custom_call.1} parent=1 // pred_fallthru
      _
    // Predicated region
    $region26: #{tpu_custom_call.1} parent=1 // pred_check
      _
    $region27: #{tpu_custom_call.1} parent=1 // pred_check_branch
      %1211 = sbr.rel (0) target = $region29
    $region28: #{tpu_custom_call.1} parent=1 // pred_region
      %1212 = dma.done [#allocation5], 128
    $region29: #{tpu_custom_call.1} parent=1 // pred_fallthru
      _
    // Predicated region
    $region30: #{tpu_custom_call.1} parent=1 // pred_check
      _
    $region31: #{tpu_custom_call.1} parent=1 // pred_check_branch
      %1214 = sbr.rel (0) target = $region33
    $region32: #{tpu_custom_call.1} parent=1 // pred_region
      %1215 = dma.done [#allocation5], 128
    $region33: #{tpu_custom_call.1} parent=1 // pred_fallthru
      _
    %1216 = vsyncpa [#allocation3], 1
    %1217 = vsyncpa [#allocation5], 1

</llo_original>
